<compile_context>
chip_gen: v7x
topology: tpu7x:2x2x1
jax: 0.10.0
libtpu: 0.0.40
codegen_flags: <defaults>
</compile_context>

<pallas_src>
import jax
import jax.numpy as jnp
from jax import lax
from jax.experimental import pallas as pl
from jax.experimental.pallas import tpu as pltpu


_R_PAD = 128  # lane-padded width of the refusal-score output block (lane-dense stores)


def _round_up(x, m):
    return ((x + m - 1) // m) * m


def _vmem_capacity_bytes():
    try:
        return int(pltpu.get_tpu_info().vmem_capacity_bytes)
    except Exception:
        return 128 * 1024 * 1024  # v5e/v6e physical VMEM; v7x reports 64 MiB itself


def _bspec(shape, index_map, buffers=None):
    """BlockSpec with an optional buffer-count hint (falls back if unsupported)."""
    if buffers is not None:
        try:
            return pl.BlockSpec(shape, index_map, pipeline_mode=pl.Buffered(buffers))
        except (TypeError, AttributeError):
            pass
    return pl.BlockSpec(shape, index_map)


def _vmem_limit_bytes(tb, H, E, tn, n_j, mm_item, cap):
    # Headroom for compiler-internal scratch: on v7x (64 MiB) this requests ~50 MiB,
    # on v5e/v6e (128 MiB) up to ~100 MiB.
    budget = int(cap * 0.78)
    wbuf = 1 if n_j == 1 else 2                                  # resident vs streamed
    weights = wbuf * ((2 * H + E) * tn * mm_item + 2 * tn * 4)   # Wh/Wu/Wp + bias/wor
    weights += H * 4 + 4                                         # wr + br (single-buffered)
    acts = 2 * tb * (2 * H + E) * 4                              # h/u/p, double-buffered
    outs = 2 * tb * (tn + _R_PAD) * 4                            # out + r, double-buffered
    need = 2 * (weights + acts + outs) + (2 << 20)               # 2x slack
    return int(min(budget, max(need, 16 * 1024 * 1024)))


def enhanced_kan_kernel(h_ref, u_ref, p_ref, wh_ref, wu_ref, wp_ref,
                        b_ref, wor_ref, wr_ref, br_ref, out_ref, r_ref):
    """One (batch-tile i, output-tile j) grid step.

    h_ref:   (tb, H)   f32 hidden_states (resident across the j sweep)
    u_ref:   (tb, H)   f32 user_intent
    p_ref:   (tb, E)   f32 emotional_state.position
    wh_ref:  (H, tn)   Wo[:, :H].T        (matmul dtype)
    wu_ref:  (H, tn)   Wo[:, H:2H].T      (matmul dtype)
    wp_ref:  (E, tn)   Wo[:, 2H:2H+E].T   (matmul dtype)
    b_ref:   (1, tn)   override bias (f32)
    wor_ref: (1, tn)   refusal-score column of Wo (f32)
    wr_ref:  (1, H)    refusal-detector weight (f32)
    br_ref:  (1, 1)    refusal-detector bias (f32)
    out_ref: (tb, tn)  modified hidden states (f32)
    r_ref:   (tb, 128) refusal scores broadcast across lanes (wrapper keeps col 0)
    """
    H = h_ref.shape[1]
    E = p_ref.shape[1]
    tn = out_ref.shape[1]
    mm = wh_ref.dtype
    j = pl.program_id(1)

    h = h_ref[...]                                               # (tb, H) f32

    # refusal_scores = sigmoid(h @ wr.T + br): exact-f32 VPU mul + XLU lane reduce
    # (rides in otherwise idle slots of this MXU/DMA-bound kernel).
    logit = jnp.sum(h * wr_ref[...], axis=-1, keepdims=True) + br_ref[...]
    r = jax.nn.sigmoid(logit)                                    # (tb, 1) f32

    # override[:, j*tn:(j+1)*tn]: two MXU GEMMs with f32 accumulate ...
    acc = jnp.dot(h.astype(mm), wh_ref[...], preferred_element_type=jnp.float32)
    acc = acc + jnp.dot(u_ref[...].astype(mm), wu_ref[...],
                        preferred_element_type=jnp.float32)
    # ... + the tiny emotional-position term as unrolled rank-1 VPU updates when E
    # is small (keeps undersized K=E matmuls off the MXU) ...
    if E <= 16:
        p32 = p_ref[...]                                         # (tb, E) f32
        wp32 = wp_ref[...].astype(jnp.float32)                   # (E, tn)
        for e in range(E):
            acc = acc + p32[:, e:e + 1] * wp32[e:e + 1, :]
    else:
        acc = acc + jnp.dot(p_ref[...].astype(mm), wp_ref[...],
                            preferred_element_type=jnp.float32)
    # ... + bias + rank-1 r * Wo_r update (the MXU never sees a K=1 matmul).
    override = acc + b_ref[...] + r * wor_ref[...]               # (tb, tn) f32

    # modified = h*(1-r) + override*r ;  out = h + 0.01*(modified - h)
    #          = h + 0.01 * r * (override - h)
    if tn == H:
        h_n = h
    else:
        start = pl.multiple_of(j * tn, tn)                       # tn is a 128-multiple here
        h_n = h_ref[:, pl.ds(start, tn)]
    out_ref[...] = h_n + jnp.float32(0.01) * (r * (override - h_n))

    # Lane-dense refusal-score store; block index (i, 0) stays resident across j.
    r_ref[...] = jnp.broadcast_to(r, r_ref.shape)


def pack_enhanced_kan_params(params, hidden_size, num_emotional_dimensions,
                             matmul_dtype=jnp.bfloat16):
    """Repack torch-layout weights ONCE, outside the per-call path.

    params (torch (out, in) layout):
      'wr' (1, H), 'br' (1,)        -- refusal_detector
      'wo' (H, 2H+E+1), 'bo' (H,)   -- override_generator
    The GEMM operands (wh/wu/wp) may be stored in bf16 (MXU-native on v5e/v6e/v7x,
    f32 accumulate, halves weight DMA); everything used by the f32 epilogue
    (bias, wor, wr, br) stays f32.
    """
    H, E = hidden_size, num_emotional_dimensions
    wo = jnp.asarray(params["wo"], jnp.float32)       # (H, 2H+E+1)
    bo = jnp.asarray(params["bo"], jnp.float32)       # (H,)
    wr = jnp.asarray(params["wr"], jnp.float32)       # (1, H)
    br = jnp.asarray(params["br"], jnp.float32)       # (1,)
    return {
        "wh": wo[:, :H].T.astype(matmul_dtype),               # (H, H)
        "wu": wo[:, H:2 * H].T.astype(matmul_dtype),          # (H, H)
        "wp": wo[:, 2 * H:2 * H + E].T.astype(matmul_dtype),  # (E, H)
        "b": bo[None, :],                                     # (1, H) f32
        "wor": wo[:, 2 * H + E:].T,                           # (1, H) f32
        "wr": wr,                                             # (1, H) f32
        "br": br[None, :],                                    # (1, 1) f32
    }


def enhanced_kan_forward(hidden_states, user_intent, position, packed,
                         *, tile_b=256, tile_n=512):
    """EnhancedKAN.forward. Returns (modified_hidden_states, refusal_scores)."""
    wh, wu, wp = packed["wh"], packed["wu"], packed["wp"]
    b, wor, wr, br = packed["b"], packed["wor"], packed["wr"], packed["br"]
    H = wr.shape[1]
    E = wp.shape[0]
    B = hidden_states.shape[0]
    mm_item = jnp.dtype(wh.dtype).itemsize
    cap = _vmem_capacity_bytes()

    # --- batch (M) tiling: >=2 tiles whenever possible so v7x shards both TCs ---
    tile_b = max(8, _round_up(tile_b, 8))
    if B <= 8:
        tb, Bp = B, B                          # single full-dim tile, no batch padding
    else:
        bp8 = _round_up(B, 8)
        tb = min(tile_b, bp8)
        if bp8 // tb < 2:
            tb = _round_up(-(-bp8 // 2), 8)    # split so both v7x TensorCores get work
        Bp = _round_up(B, tb)

    # --- output (H) tiling: stream the weight only if it can't stay VMEM-resident ---
    tile_n = max(128, _round_up(tile_n, 128))
    w_bytes = (2 * H + E) * H * mm_item
    weight_resident = w_bytes <= int(0.5 * cap)
    if weight_resident or H <= tile_n or H % tile_n != 0:
        tn, n_j = H, 1
    else:
        tn, n_j = tile_n, H // tile_n
    w_bufs = 1 if n_j == 1 else None           # single-buffer grid-invariant weights

    # Module semantics: everything is computed in float32 (no-op if already f32).
    h32 = hidden_states.astype(jnp.float32)
    u32 = user_intent.astype(jnp.float32)
    p32 = position.astype(jnp.float32)
    if Bp > B:                                 # ragged batch: pad rows only
        pad = ((0, Bp - B), (0, 0))
        h32, u32, p32 = jnp.pad(h32, pad), jnp.pad(u32, pad), jnp.pad(p32, pad)

    flops = 2 * Bp * (2 * H + E + 1) * H + 10 * Bp * H
    bytes_accessed = (Bp * (2 * H + E) * 4                 # activations in
                      + (2 * H + E) * H * mm_item          # GEMM weights
                      + 3 * H * 4 + 4                      # bias / wor / wr / br
                      + Bp * H * 4 + Bp * _R_PAD * 4)      # outputs

    out_pad, r_pad = pl.pallas_call(
        enhanced_kan_kernel,
        out_shape=(
            jax.ShapeDtypeStruct((Bp, H), jnp.float32),
            jax.ShapeDtypeStruct((Bp, _R_PAD), jnp.float32),
        ),
        grid_spec=pltpu.PrefetchScalarGridSpec(
            num_scalar_prefetch=0,
            grid=(Bp // tb, n_j),
            in_specs=[
                pl.BlockSpec((tb, H), lambda i, j: (i, 0)),      # h (resident over j)
                pl.BlockSpec((tb, H), lambda i, j: (i, 0)),      # u
                pl.BlockSpec((tb, E), lambda i, j: (i, 0)),      # p
                _bspec((H, tn), lambda i, j: (0, j), w_bufs),    # Wh
                _bspec((H, tn), lambda i, j: (0, j), w_bufs),    # Wu
                _bspec((E, tn), lambda i, j: (0, j), w_bufs),    # Wp
                _bspec((1, tn), lambda i, j: (0, j), w_bufs),    # override bias
                _bspec((1, tn), lambda i, j: (0, j), w_bufs),    # wor (r column of Wo)
                _bspec((1, H), lambda i, j: (0, 0), 1),          # wr  (grid-invariant)
                _bspec((1, 1), lambda i, j: (0, 0), 1),          # br  (grid-invariant)
            ],
            out_specs=(
                pl.BlockSpec((tb, tn), lambda i, j: (i, j)),
                pl.BlockSpec((tb, _R_PAD), lambda i, j: (i, 0)),
            ),
        ),
        compiler_params=pltpu.CompilerParams(
            dimension_semantics=("parallel", "arbitrary"),
            vmem_limit_bytes=_vmem_limit_bytes(tb, H, E, tn, n_j, mm_item, cap),
        ),
        cost_estimate=pl.CostEstimate(
            flops=int(flops),
            transcendentals=int(Bp),
            bytes_accessed=int(bytes_accessed),
        ),
    )(h32, u32, p32, wh, wu, wp, b, wor, wr, br)

    return out_pad[:B], r_pad[:B, :1]


def _reference(hidden_states, user_intent, position, params):
    """Pure-JAX reference with HIGHEST matmul precision (exact f32 baseline)."""
    hi = lax.Precision.HIGHEST
    h = hidden_states.astype(jnp.float32)
    u = user_intent.astype(jnp.float32)
    p = position.astype(jnp.float32)
    r = jax.nn.sigmoid(jnp.dot(h, params["wr"].T, precision=hi) + params["br"])
    ov_in = jnp.concatenate([h, u, p, r], axis=1)
    ov = jnp.dot(ov_in, params["wo"].T, precision=hi) + params["bo"]
    modified = h * (1.0 - r) + ov * r
    return h + 0.01 * (modified - h), r


if __name__ == "__main__":
    B, H, E, V = 2, 32, 4, 64  # vocab_size V only affects the unused output_modifier

    key = jax.random.PRNGKey(0)
    k_h, k_u, k_p, k_wr, k_br, k_wo, k_bo = jax.random.split(key, 7)

    hidden_states = jax.random.normal(k_h, (B, H), dtype=jnp.float32)
    user_intent = jax.random.normal(k_u, (B, H), dtype=jnp.float32)
    position = jax.random.normal(k_p, (B, E), dtype=jnp.float32)  # emotional_state.position

    in_feat = 2 * H + E + 1
    params = {
        "wr": jax.random.normal(k_wr, (1, H), dtype=jnp.float32) * 0.1,
        "br": jax.random.normal(k_br, (1,), dtype=jnp.float32) * 0.1,
        "wo": jax.random.normal(k_wo, (H, in_feat), dtype=jnp.float32) * 0.1,
        "bo": jax.random.normal(k_bo, (H,), dtype=jnp.float32) * 0.1,
    }

    ref_out, ref_r = _reference(hidden_states, user_intent, position, params)

    fwd = jax.jit(enhanced_kan_forward, static_argnames=("tile_b", "tile_n"))

    # f32-matmul path. Note: the in-kernel GEMMs run at Mosaic's default f32
    # precision; at production H either raise precision or scale tolerances.
    packed_f32 = pack_enhanced_kan_params(params, H, E, matmul_dtype=jnp.float32)
    out, r = fwd(hidden_states, user_intent, position, packed_f32)
    out = jax.block_until_ready(out)
    r = jax.block_until_ready(r)
    assert out.shape == (B, H) and r.shape == (B, 1)
    assert jnp.allclose(out, ref_out, atol=5e-4, rtol=5e-4)
    assert jnp.allclose(r, ref_r, atol=1e-4, rtol=0)   # logit is exact-f32 VPU/XLU work

    # bf16-matmul path (MXU-native on all generations, f32 accumulate + f32 epilogue).
    packed_bf16 = pack_enhanced_kan_params(params, H, E, matmul_dtype=jnp.bfloat16)
    out_bf, r_bf = fwd(hidden_states, user_intent, position, packed_bf16)
    out_bf = jax.block_until_ready(out_bf)
    r_bf = jax.block_until_ready(r_bf)
    assert out_bf.shape == (B, H) and r_bf.shape == (B, 1)
    assert jnp.allclose(out_bf, ref_out, atol=5e-3, rtol=0)
    assert jnp.allclose(r_bf, ref_r, atol=1e-3, rtol=0)  # r path stays f32 even here

    print("KERNEL_OK")
</pallas_src>

<mosaic_0001>
module attributes {stable_mosaic.version = 11 : i64} {
  func.func @enhanced_kan_kernel(%arg0: i32, %arg1: i32, %arg2: memref<2x32xf32, #tpu.memory_space<vmem>>, %arg3: memref<2x32xf32, #tpu.memory_space<vmem>>, %arg4: memref<2x4xf32, #tpu.memory_space<vmem>>, %arg5: memref<32x32xf32, #tpu.memory_space<vmem>>, %arg6: memref<32x32xf32, #tpu.memory_space<vmem>>, %arg7: memref<4x32xf32, #tpu.memory_space<vmem>>, %arg8: memref<1x32xf32, #tpu.memory_space<vmem>>, %arg9: memref<1x32xf32, #tpu.memory_space<vmem>>, %arg10: memref<1x32xf32, #tpu.memory_space<vmem>>, %arg11: memref<1x1xf32, #tpu.memory_space<vmem>>, %arg12: memref<2x32xf32, #tpu.memory_space<vmem>>, %arg13: memref<2x128xf32, #tpu.memory_space<vmem>>) attributes {dimension_semantics = [#tpu.dimension_semantics<parallel>, #tpu.dimension_semantics<arbitrary>], iteration_bounds = array<i64: 1, 1>, scalar_prefetch = 0 : i64, scratch_operands = 0 : i64, tpu.core_type = #tpu.core_type<tc>, window_params = [{transform_indices = @transform_0, window_bounds = array<i64: 2, 32>}, {transform_indices = @transform_1, window_bounds = array<i64: 2, 32>}, {transform_indices = @transform_2, window_bounds = array<i64: 2, 4>}, {pipeline_mode = #tpu.pipeline_mode<synchronous>, transform_indices = @transform_3, window_bounds = array<i64: 32, 32>}, {pipeline_mode = #tpu.pipeline_mode<synchronous>, transform_indices = @transform_4, window_bounds = array<i64: 32, 32>}, {pipeline_mode = #tpu.pipeline_mode<synchronous>, transform_indices = @transform_5, window_bounds = array<i64: 4, 32>}, {pipeline_mode = #tpu.pipeline_mode<synchronous>, transform_indices = @transform_6, window_bounds = array<i64: 1, 32>}, {pipeline_mode = #tpu.pipeline_mode<synchronous>, transform_indices = @transform_7, window_bounds = array<i64: 1, 32>}, {pipeline_mode = #tpu.pipeline_mode<synchronous>, transform_indices = @transform_8, window_bounds = array<i64: 1, 32>}, {pipeline_mode = #tpu.pipeline_mode<synchronous>, transform_indices = @transform_9, window_bounds = array<i64: 1, 1>}, {transform_indices = @transform_10, window_bounds = array<i64: 2, 32>}, {transform_indices = @transform_11, window_bounds = array<i64: 2, 128>}]} {
    %c0 = arith.constant 0 : index
    %c0_0 = arith.constant 0 : index
    %0 = vector.load %arg2[%c0, %c0_0] : memref<2x32xf32, #tpu.memory_space<vmem>>, vector<2x32xf32>
    %c0_1 = arith.constant 0 : index
    %c0_2 = arith.constant 0 : index
    %1 = vector.load %arg10[%c0_1, %c0_2] : memref<1x32xf32, #tpu.memory_space<vmem>>, vector<1x32xf32>
    %2 = vector.broadcast %1 : vector<1x32xf32> to vector<2x32xf32>
    %3 = arith.mulf %0, %2 : vector<2x32xf32>
    %cst = arith.constant dense<0.000000e+00> : vector<2xf32>
    %4 = vector.multi_reduction <add>, %3, %cst [1] : vector<2x32xf32> to vector<2xf32>
    %5 = vector.shape_cast %4 : vector<2xf32> to vector<2x1xf32>
    %c0_3 = arith.constant 0 : index
    %c0_4 = arith.constant 0 : index
    %6 = vector.load %arg11[%c0_3, %c0_4] : memref<1x1xf32, #tpu.memory_space<vmem>>, vector<1x1xf32>
    %7 = vector.broadcast %6 : vector<1x1xf32> to vector<2x1xf32>
    %8 = arith.addf %5, %7 : vector<2x1xf32>
    %9 = arith.negf %8 : vector<2x1xf32>
    %10 = math.exp %9 : vector<2x1xf32>
    %cst_5 = arith.constant 1.000000e+00 : f32
    %11 = vector.broadcast %cst_5 : f32 to vector<2x1xf32>
    %12 = arith.addf %11, %10 : vector<2x1xf32>
    %13 = arith.divf %11, %12 : vector<2x1xf32>
    %c0_6 = arith.constant 0 : index
    %c0_7 = arith.constant 0 : index
    %14 = vector.load %arg5[%c0_6, %c0_7] : memref<32x32xf32, #tpu.memory_space<vmem>>, vector<32x32xf32>
    %cst_8 = arith.constant dense<0.000000e+00> : vector<2x32xf32>
    %15 = tpu.matmul %0, %14, %cst_8 {dimension_numbers = #tpu.dot_dimension_numbers<[1], [0], [0], [1], [0, 0, 1, 1], [], []>} : vector<2x32xf32>, vector<32x32xf32>, vector<2x32xf32> -> vector<2x32xf32>
    %c0_9 = arith.constant 0 : index
    %c0_10 = arith.constant 0 : index
    %16 = vector.load %arg3[%c0_9, %c0_10] : memref<2x32xf32, #tpu.memory_space<vmem>>, vector<2x32xf32>
    %c0_11 = arith.constant 0 : index
    %c0_12 = arith.constant 0 : index
    %17 = vector.load %arg6[%c0_11, %c0_12] : memref<32x32xf32, #tpu.memory_space<vmem>>, vector<32x32xf32>
    %cst_13 = arith.constant dense<0.000000e+00> : vector<2x32xf32>
    %18 = tpu.matmul %16, %17, %cst_13 {dimension_numbers = #tpu.dot_dimension_numbers<[1], [0], [0], [1], [0, 0, 1, 1], [], []>} : vector<2x32xf32>, vector<32x32xf32>, vector<2x32xf32> -> vector<2x32xf32>
    %19 = arith.addf %15, %18 : vector<2x32xf32>
    %c0_14 = arith.constant 0 : index
    %c0_15 = arith.constant 0 : index
    %20 = vector.load %arg4[%c0_14, %c0_15] : memref<2x4xf32, #tpu.memory_space<vmem>>, vector<2x4xf32>
    %c0_16 = arith.constant 0 : index
    %c0_17 = arith.constant 0 : index
    %21 = vector.load %arg7[%c0_16, %c0_17] : memref<4x32xf32, #tpu.memory_space<vmem>>, vector<4x32xf32>
    %22 = vector.extract_strided_slice %20 {offsets = [0, 0], sizes = [2, 1], strides = [1, 1]} : vector<2x4xf32> to vector<2x1xf32>
    %23 = vector.extract_strided_slice %21 {offsets = [0, 0], sizes = [1, 32], strides = [1, 1]} : vector<4x32xf32> to vector<1x32xf32>
    %24 = vector.broadcast %22 : vector<2x1xf32> to vector<2x32xf32>
    %25 = vector.broadcast %23 : vector<1x32xf32> to vector<2x32xf32>
    %26 = arith.mulf %24, %25 : vector<2x32xf32>
    %27 = arith.addf %19, %26 : vector<2x32xf32>
    %28 = vector.extract_strided_slice %20 {offsets = [0, 1], sizes = [2, 1], strides = [1, 1]} : vector<2x4xf32> to vector<2x1xf32>
    %29 = vector.extract_strided_slice %21 {offsets = [1, 0], sizes = [1, 32], strides = [1, 1]} : vector<4x32xf32> to vector<1x32xf32>
    %30 = vector.broadcast %28 : vector<2x1xf32> to vector<2x32xf32>
    %31 = vector.broadcast %29 : vector<1x32xf32> to vector<2x32xf32>
    %32 = arith.mulf %30, %31 : vector<2x32xf32>
    %33 = arith.addf %27, %32 : vector<2x32xf32>
    %34 = vector.extract_strided_slice %20 {offsets = [0, 2], sizes = [2, 1], strides = [1, 1]} : vector<2x4xf32> to vector<2x1xf32>
    %35 = vector.extract_strided_slice %21 {offsets = [2, 0], sizes = [1, 32], strides = [1, 1]} : vector<4x32xf32> to vector<1x32xf32>
    %36 = vector.broadcast %34 : vector<2x1xf32> to vector<2x32xf32>
    %37 = vector.broadcast %35 : vector<1x32xf32> to vector<2x32xf32>
    %38 = arith.mulf %36, %37 : vector<2x32xf32>
    %39 = arith.addf %33, %38 : vector<2x32xf32>
    %40 = vector.extract_strided_slice %20 {offsets = [0, 3], sizes = [2, 1], strides = [1, 1]} : vector<2x4xf32> to vector<2x1xf32>
    %41 = vector.extract_strided_slice %21 {offsets = [3, 0], sizes = [1, 32], strides = [1, 1]} : vector<4x32xf32> to vector<1x32xf32>
    %42 = vector.broadcast %40 : vector<2x1xf32> to vector<2x32xf32>
    %43 = vector.broadcast %41 : vector<1x32xf32> to vector<2x32xf32>
    %44 = arith.mulf %42, %43 : vector<2x32xf32>
    %45 = arith.addf %39, %44 : vector<2x32xf32>
    %c0_18 = arith.constant 0 : index
    %c0_19 = arith.constant 0 : index
    %46 = vector.load %arg8[%c0_18, %c0_19] : memref<1x32xf32, #tpu.memory_space<vmem>>, vector<1x32xf32>
    %47 = vector.broadcast %46 : vector<1x32xf32> to vector<2x32xf32>
    %48 = arith.addf %45, %47 : vector<2x32xf32>
    %c0_20 = arith.constant 0 : index
    %c0_21 = arith.constant 0 : index
    %49 = vector.load %arg9[%c0_20, %c0_21] : memref<1x32xf32, #tpu.memory_space<vmem>>, vector<1x32xf32>
    %50 = vector.broadcast %13 : vector<2x1xf32> to vector<2x32xf32>
    %51 = vector.broadcast %49 : vector<1x32xf32> to vector<2x32xf32>
    %52 = arith.mulf %50, %51 : vector<2x32xf32>
    %53 = arith.addf %48, %52 : vector<2x32xf32>
    %54 = arith.subf %53, %0 : vector<2x32xf32>
    %55 = vector.broadcast %13 : vector<2x1xf32> to vector<2x32xf32>
    %56 = arith.mulf %55, %54 : vector<2x32xf32>
    %cst_22 = arith.constant 0.00999999977 : f32
    %57 = vector.broadcast %cst_22 : f32 to vector<2x32xf32>
    %58 = arith.mulf %57, %56 : vector<2x32xf32>
    %59 = arith.addf %0, %58 : vector<2x32xf32>
    %c0_23 = arith.constant 0 : index
    %c0_24 = arith.constant 0 : index
    %60 = vector.load %arg12[%c0_23, %c0_24] : memref<2x32xf32, #tpu.memory_space<vmem>>, vector<2x32xf32>
    tpu.vector_store %arg12[%c0_23, %c0_24], %59 {strides = array<i32>} : memref<2x32xf32, #tpu.memory_space<vmem>>, vector<2x32xf32>,
    %61 = vector.shape_cast %13 : vector<2x1xf32> to vector<2x1xf32>
    %62 = vector.broadcast %61 : vector<2x1xf32> to vector<2x128xf32>
    %c0_25 = arith.constant 0 : index
    %c0_26 = arith.constant 0 : index
    %63 = vector.load %arg13[%c0_25, %c0_26] : memref<2x128xf32, #tpu.memory_space<vmem>>, vector<2x128xf32>
    tpu.vector_store %arg13[%c0_25, %c0_26], %62 {strides = array<i32>} : memref<2x128xf32, #tpu.memory_space<vmem>>, vector<2x128xf32>,
    return
  }
  func.func @transform_0(%arg0: i32, %arg1: i32) -> (i32, i32) {
    %c0_i32 = arith.constant 0 : i32
    %c0_i32_0 = arith.constant 0 : i32
    return %arg0, %c0_i32 : i32, i32
  }
  func.func @transform_1(%arg0: i32, %arg1: i32) -> (i32, i32) {
    %c0_i32 = arith.constant 0 : i32
    %c0_i32_0 = arith.constant 0 : i32
    return %arg0, %c0_i32 : i32, i32
  }
  func.func @transform_2(%arg0: i32, %arg1: i32) -> (i32, i32) {
    %c0_i32 = arith.constant 0 : i32
    %c0_i32_0 = arith.constant 0 : i32
    return %arg0, %c0_i32 : i32, i32
  }
  func.func @transform_3(%arg0: i32, %arg1: i32) -> (i32, i32) {
    %c0_i32 = arith.constant 0 : i32
    %c0_i32_0 = arith.constant 0 : i32
    return %c0_i32, %arg1 : i32, i32
  }
  func.func @transform_4(%arg0: i32, %arg1: i32) -> (i32, i32) {
    %c0_i32 = arith.constant 0 : i32
    %c0_i32_0 = arith.constant 0 : i32
    return %c0_i32, %arg1 : i32, i32
  }
  func.func @transform_5(%arg0: i32, %arg1: i32) -> (i32, i32) {
    %c0_i32 = arith.constant 0 : i32
    %c0_i32_0 = arith.constant 0 : i32
    return %c0_i32, %arg1 : i32, i32
  }
  func.func @transform_6(%arg0: i32, %arg1: i32) -> (i32, i32) {
    %c0_i32 = arith.constant 0 : i32
    %c0_i32_0 = arith.constant 0 : i32
    return %c0_i32, %arg1 : i32, i32
  }
  func.func @transform_7(%arg0: i32, %arg1: i32) -> (i32, i32) {
    %c0_i32 = arith.constant 0 : i32
    %c0_i32_0 = arith.constant 0 : i32
    return %c0_i32, %arg1 : i32, i32
  }
  func.func @transform_8(%arg0: i32, %arg1: i32) -> (i32, i32) {
    %c0_i32 = arith.constant 0 : i32
    %c0_i32_0 = arith.constant 0 : i32
    %c0_i32_1 = arith.constant 0 : i32
    return %c0_i32, %c0_i32_0 : i32, i32
  }
  func.func @transform_9(%arg0: i32, %arg1: i32) -> (i32, i32) {
    %c0_i32 = arith.constant 0 : i32
    %c0_i32_0 = arith.constant 0 : i32
    %c0_i32_1 = arith.constant 0 : i32
    return %c0_i32, %c0_i32_0 : i32, i32
  }
  func.func @transform_10(%arg0: i32, %arg1: i32) -> (i32, i32) {
    %c0_i32 = arith.constant 0 : i32
    return %arg0, %arg1 : i32, i32
  }
  func.func @transform_11(%arg0: i32, %arg1: i32) -> (i32, i32) {
    %c0_i32 = arith.constant 0 : i32
    %c0_i32_0 = arith.constant 0 : i32
    return %arg0, %c0_i32 : i32, i32
  }
}

</mosaic_0001>

<llo_original>
// kernel: enhanced_kan_forward.1
$region0: #{enhanced_kan_forward.1}
  #allocation0 [shape = 'u32[]', space=smem, size = 0x4, offset = 0x4, fixed_abs, tag = 'smem constant byte address 0x4 - core index']
  #allocation1 [shape = 'u32[144,128]{1,0:T(1,128)}', space=vmem, size = 0x12000, scoped, tag = 'internal scratch']
  #allocation2 [shape = 'f32[1,1]{1,0:T(1,128)S(1)}', space=vmem, size = 0x200, scoped, tag = 'scoped memory for enhanced_kan_forward.1']
  %s0 = inlined_call_operand.vmem [shape: f32[2,32], index: 0, kind: input, shape index: {}]
  %s1 = inlined_call_operand.hbm [shape: f32[2,32], index: 1, kind: input, shape index: {}]
  %s2 = inlined_call_operand.hbm [shape: f32[2,4], index: 2, kind: input, shape index: {}]
  %s3 = inlined_call_operand.hbm [shape: f32[32,32], index: 3, kind: input, shape index: {}]
  %s4 = inlined_call_operand.vmem [shape: f32[32,32], index: 4, kind: input, shape index: {}]
  %s5 = inlined_call_operand.hbm [shape: f32[4,32], index: 5, kind: input, shape index: {}]
  %s6 = inlined_call_operand.hbm [shape: f32[1,32], index: 6, kind: input, shape index: {}]
  %s7 = inlined_call_operand.hbm [shape: f32[1,32], index: 7, kind: input, shape index: {}]
  %s8 = inlined_call_operand.hbm [shape: f32[1,32], index: 8, kind: input, shape index: {}]
  %s9 = inlined_call_operand.<no memory space> [shape: f32[1,1], index: 9, kind: input, shape index: {}]
  %s10 = inlined_call_operand.hbm [shape: f32[2,32], index: 10, kind: output, shape index: {0}]
  %s11 = inlined_call_operand.vmem [shape: f32[2,128], index: 11, kind: output, shape index: {1}]
  %12 = xla_tuple %s10, %s11
  %s13 = sld [smem:[#allocation0]]
  $region86: #{enhanced_kan_forward.1} parent=0
    _
  %s15 = ssub.s32 1, %s13
  %s16 = scalar_select 0, %s15, %s13
  %v17 = vstv %s9
  %18 = vst [vmem:[#allocation2] sm:$0x1] %v17
  $region1: #{enhanced_kan_forward.1} parent=0
    #allocation3 [shape = 'u8[1024]{0}', space=vmem, size = 0x400, scoped, tag = 'input window, operand 1, single buffered']
    #allocation4 [shape = 's32[1]{0}', space=sflag, size = 0x4, scoped, tag = 'scoped memory for enhanced_kan_forward.1']
    #allocation5 [shape = 's32[1]{0}', space=sflag, size = 0x4, scoped, tag = 'scoped memory for enhanced_kan_forward.1']
    #allocation6 [shape = 'u8[1024]{0}', space=vmem, size = 0x400, scoped, tag = 'input window, operand 2, single buffered']
    #allocation7 [shape = 's32[1]{0}', space=sflag, size = 0x4, scoped, tag = 'scoped memory for enhanced_kan_forward.1']
    #allocation8 [shape = 'u8[16384]{0}', space=vmem, size = 0x4000, scoped, tag = 'input window, operand 3, single buffered']
    #allocation9 [shape = 'u8[2048]{0}', space=vmem, size = 0x800, scoped, tag = 'input window, operand 5, single buffered']
    #allocation10 [shape = 's32[1]{0}', space=sflag, size = 0x4, scoped, tag = 'scoped memory for enhanced_kan_forward.1']
    #allocation11 [shape = 'u8[512]{0}', space=vmem, size = 0x400, scoped, tag = 'input window, operand 6, single buffered']
    #allocation12 [shape = 'u8[512]{0}', space=vmem, size = 0x400, scoped, tag = 'input window, operand 7, single buffered']
    #allocation13 [shape = 's32[1]{0}', space=sflag, size = 0x4, scoped, tag = 'scoped memory for enhanced_kan_forward.1']
    #allocation14 [shape = 'u8[512]{0}', space=vmem, size = 0x400, scoped, tag = 'input window, operand 8, single buffered']
    #allocation15 [shape = 'u8[1024]{0}', space=vmem, size = 0x400, scoped, tag = 'output window, operand 0, single buffered']
    %19 = vsyncpa [#allocation4], 0
    %20 = vsyncpa [#allocation7], 0
    %21 = vsyncpa [#allocation10], 0
    %22 = vsyncpa [#allocation13], 0
    %23 = vsyncpa [#allocation5], 0
    // Predicated region
    $region2: #{enhanced_kan_forward.1} parent=1 // pred_check
      _
    $region3: #{enhanced_kan_forward.1} parent=1 // pred_check_branch
      %25 = sbr.rel (0) target = $region5
    $region4: #{enhanced_kan_forward.1} parent=1 // pred_region
      _
    $region5: #{enhanced_kan_forward.1} parent=1 // pred_fallthru
      _
    // Predicated region
    $region6: #{enhanced_kan_forward.1} parent=1 // pred_check
      _
    $region7: #{enhanced_kan_forward.1} parent=1 // pred_check_branch
      %27 = sbr.rel (0) target = $region9
    $region8: #{enhanced_kan_forward.1} parent=1 // pred_region
      %s29 = ssub.s32 32, 32
      %30 = vsyncadd [#allocation4], %s29
      %s32 = sshll.u32 [#allocation3], 4
      %s33 = int_to_ptr.vmem [resolvable:$true] %s32
      %35 = dma.hbm_to_vmem [thread:$0]  %s1, 32, %s33, [#allocation4]
    $region9: #{enhanced_kan_forward.1} parent=1 // pred_fallthru
      _
    // Predicated region
    $region10: #{enhanced_kan_forward.1} parent=1 // pred_check
      _
    $region11: #{enhanced_kan_forward.1} parent=1 // pred_check_branch
      %37 = sbr.rel (0) target = $region13
    $region12: #{enhanced_kan_forward.1} parent=1 // pred_region
      %s39 = ssub.s32 32, 32
      %40 = vsyncadd [#allocation7], %s39
      %s42 = sshll.u32 [#allocation6], 4
      %s43 = int_to_ptr.vmem [resolvable:$true] %s42
      %45 = dma.hbm_to_vmem [thread:$0]  %s2, 32, %s43, [#allocation7]
    $region13: #{enhanced_kan_forward.1} parent=1 // pred_fallthru
      _
    // Predicated region
    $region14: #{enhanced_kan_forward.1} parent=1 // pred_check
      _
    $region15: #{enhanced_kan_forward.1} parent=1 // pred_check_branch
      %47 = sbr.rel (0) target = $region17
    $region16: #{enhanced_kan_forward.1} parent=1 // pred_region
      %s49 = ssub.s32 512, 512
      %50 = vsyncadd [#allocation7], %s49
      %s51 = sshll.u32 [#allocation8], 4
      %s52 = int_to_ptr.vmem [resolvable:$true] %s51
      %57 = dma.hbm_to_vmem [thread:$0]  %s3, 512, %s52, [#allocation7], 128, 128, 8
    $region17: #{enhanced_kan_forward.1} parent=1 // pred_fallthru
      _
    // Predicated region
    $region18: #{enhanced_kan_forward.1} parent=1 // pred_check
      _
    $region19: #{enhanced_kan_forward.1} parent=1 // pred_check_branch
      %59 = sbr.rel (0) target = $region21
    $region20: #{enhanced_kan_forward.1} parent=1 // pred_region
      _
    $region21: #{enhanced_kan_forward.1} parent=1 // pred_fallthru
      _
    // Predicated region
    $region22: #{enhanced_kan_forward.1} parent=1 // pred_check
      _
    $region23: #{enhanced_kan_forward.1} parent=1 // pred_check_branch
      %61 = sbr.rel (0) target = $region25
    $region24: #{enhanced_kan_forward.1} parent=1 // pred_region
      %s63 = ssub.s32 64, 64
      %64 = vsyncadd [#allocation10], %s63
      %s66 = sshll.u32 [#allocation9], 4
      %s67 = int_to_ptr.vmem [resolvable:$true] %s66
      %69 = dma.hbm_to_vmem [thread:$0]  %s5, 64, %s67, [#allocation10]
    $region25: #{enhanced_kan_forward.1} parent=1 // pred_fallthru
      _
    // Predicated region
    $region26: #{enhanced_kan_forward.1} parent=1 // pred_check
      _
    $region27: #{enhanced_kan_forward.1} parent=1 // pred_check_branch
      %71 = sbr.rel (0) target = $region29
    $region28: #{enhanced_kan_forward.1} parent=1 // pred_region
      %s73 = ssub.s32 16, 16
      %74 = vsyncadd [#allocation10], %s73
      %s76 = sshll.u32 [#allocation11], 4
      %s77 = int_to_ptr.vmem [resolvable:$true] %s76
      %79 = dma.hbm_to_vmem [thread:$0]  %s6, 16, %s77, [#allocation10]
    $region29: #{enhanced_kan_forward.1} parent=1 // pred_fallthru
      _
    // Predicated region
    $region30: #{enhanced_kan_forward.1} parent=1 // pred_check
      _
    $region31: #{enhanced_kan_forward.1} parent=1 // pred_check_branch
      %81 = sbr.rel (0) target = $region33
    $region32: #{enhanced_kan_forward.1} parent=1 // pred_region
      %s83 = ssub.s32 16, 16
      %84 = vsyncadd [#allocation13], %s83
      %s86 = sshll.u32 [#allocation12], 4
      %s87 = int_to_ptr.vmem [resolvable:$true] %s86
      %89 = dma.hbm_to_vmem [thread:$0]  %s7, 16, %s87, [#allocation13]
    $region33: #{enhanced_kan_forward.1} parent=1 // pred_fallthru
      _
    // Predicated region
    $region34: #{enhanced_kan_forward.1} parent=1 // pred_check
      _
    $region35: #{enhanced_kan_forward.1} parent=1 // pred_check_branch
      %91 = sbr.rel (0) target = $region37
    $region36: #{enhanced_kan_forward.1} parent=1 // pred_region
      %s93 = ssub.s32 16, 16
      %94 = vsyncadd [#allocation13], %s93
      %s96 = sshll.u32 [#allocation14], 4
      %s97 = int_to_ptr.vmem [resolvable:$true] %s96
      %99 = dma.hbm_to_vmem [thread:$0]  %s8, 16, %s97, [#allocation13]
    $region37: #{enhanced_kan_forward.1} parent=1 // pred_fallthru
      _
    // Predicated region
    $region38: #{enhanced_kan_forward.1} parent=1 // pred_check
      _
    $region39: #{enhanced_kan_forward.1} parent=1 // pred_check_branch
      %101 = sbr.rel (0) target = $region41
    $region40: #{enhanced_kan_forward.1} parent=1 // pred_region
      _
    $region41: #{enhanced_kan_forward.1} parent=1 // pred_fallthru
      _
    // Predicated region
    $region42: #{enhanced_kan_forward.1} parent=1 // pred_check
      _
    $region43: #{enhanced_kan_forward.1} parent=1 // pred_check_branch
      %103 = sbr.rel (0) target = $region45
    $region44: #{enhanced_kan_forward.1} parent=1 // pred_region
      %104 = dma.done [#allocation4], 32
    $region45: #{enhanced_kan_forward.1} parent=1 // pred_fallthru
      _
    // Predicated region
    $region46: #{enhanced_kan_forward.1} parent=1 // pred_check
      _
    $region47: #{enhanced_kan_forward.1} parent=1 // pred_check_branch
      %106 = sbr.rel (0) target = $region49
    $region48: #{enhanced_kan_forward.1} parent=1 // pred_region
      %107 = dma.done [#allocation7], 32
    $region49: #{enhanced_kan_forward.1} parent=1 // pred_fallthru
      _
    // Predicated region
    $region50: #{enhanced_kan_forward.1} parent=1 // pred_check
      _
    $region51: #{enhanced_kan_forward.1} parent=1 // pred_check_branch
      %109 = sbr.rel (0) target = $region53
    $region52: #{enhanced_kan_forward.1} parent=1 // pred_region
      %110 = dma.done [#allocation7], 512
    $region53: #{enhanced_kan_forward.1} parent=1 // pred_fallthru
      _
    // Predicated region
    $region54: #{enhanced_kan_forward.1} parent=1 // pred_check
      _
    $region55: #{enhanced_kan_forward.1} parent=1 // pred_check_branch
      %112 = sbr.rel (0) target = $region57
    $region56: #{enhanced_kan_forward.1} parent=1 // pred_region
      %113 = dma.done [#allocation10], 64
    $region57: #{enhanced_kan_forward.1} parent=1 // pred_fallthru
      _
    // Predicated region
    $region58: #{enhanced_kan_forward.1} parent=1 // pred_check
      _
    $region59: #{enhanced_kan_forward.1} parent=1 // pred_check_branch
      %115 = sbr.rel (0) target = $region61
    $region60: #{enhanced_kan_forward.1} parent=1 // pred_region
      %116 = dma.done [#allocation10], 16
    $region61: #{enhanced_kan_forward.1} parent=1 // pred_fallthru
      _
    // Predicated region
    $region62: #{enhanced_kan_forward.1} parent=1 // pred_check
      _
    $region63: #{enhanced_kan_forward.1} parent=1 // pred_check_branch
      %118 = sbr.rel (0) target = $region65
    $region64: #{enhanced_kan_forward.1} parent=1 // pred_region
      %119 = dma.done [#allocation13], 16
    $region65: #{enhanced_kan_forward.1} parent=1 // pred_fallthru
      _
    // Predicated region
    $region66: #{enhanced_kan_forward.1} parent=1 // pred_check
      _
    $region67: #{enhanced_kan_forward.1} parent=1 // pred_check_branch
      %121 = sbr.rel (0) target = $region69
    $region68: #{enhanced_kan_forward.1} parent=1 // pred_region
      %122 = dma.done [#allocation13], 16
    $region69: #{enhanced_kan_forward.1} parent=1 // pred_fallthru
      _
    %v123 = vld [vmem:[%s0] sm:$0x3]
    %v124 = vld [vmem:[#allocation14] sm:$0x1]
    %v126 = vlaneseq
    %v127 = vshrl.u32 %v126, 7
    %v128 = vsub.s32 0, %v127
    %v129 = vrot.slane %v124, %v128
    %v131 = vmul.f32 %v123, %v129
    %vm132 = vcmask 254976
    %v133 = vsel %vm132, %v131, 0.0
    %134 = vadd.xlane.f32.xlu0 %v133
    %v135 = vpop.xlane.xlu0 %134
    %v136 = vld [vmem:[#allocation2] sm:$0x1]
    %v138 = vlaneseq
    %v139 = vshrl.u32 %v138, 7
    %v140 = vsub.s32 0, %v139
    %v141 = vrot.slane %v136, %v140
    %v143 = vadd.f32 %v135, %v141
    %v144 = vxor.u32 %v143, 2147483648
    %v145 = vmul.f32 %v144, 1.442695
    %v146 = vpow.pop %v145
    %v147 = vadd.f32 %v146, 1.0
    %v148 = vrcp.pop %v147
    %v149 = vmul.f32 1.0, %v148
    %v150 = vld [vmem:[#allocation8] sm:$0xff]
    %v151 = vld [vmem:[#allocation8 + $0x8] sm:$0xff]
    %v152 = vld [vmem:[#allocation8 + $0x10] sm:$0xff]
    %v153 = vld [vmem:[#allocation8 + $0x18] sm:$0xff]
    %v154 = vld [vmem:[#allocation3] sm:$0x3]
    %v155 = vld [vmem:[%s4] sm:$0xff]
    %v156 = vld [vmem:[%s4 + $0x8] sm:$0xff]
    %v157 = vld [vmem:[%s4 + $0x10] sm:$0xff]
    %v158 = vld [vmem:[%s4 + $0x18] sm:$0xff]
    %vm159 = vcmask 261120
    %v161 = vsel %vm159, %v154, 0
    %163 = vmatprep.subr.mxu0 0.0
    %164 = vmatpush1.msra.mxu0 %v155
    %165 = vmatprep.subr.mxu0 0.0
    %166 = vmatpush1.msra.mxu0 %v156
    %167 = vmatprep.subr.mxu0 0.0
    %168 = vmatpush1.msra.mxu0 %v157
    %169 = vmatprep.subr.mxu0 0.0
    %170 = vmatpush1.msra.mxu0 %v158
    %171 = vmatprep.subr.mxu0 0.0
    %172 = vmatpush1.msra.mxu0 0.0
    %173 = vmatprep.subr.mxu0 0.0
    %174 = vmatpush1.msra.mxu0 0.0
    %175 = vmatprep.subr.mxu0 0.0
    %176 = vmatpush1.msra.mxu0 0.0
    %177 = vmatprep.subr.mxu0 0.0
    %178 = vmatpush1.msra.mxu0 0.0
    %179 = vmatprep.subr.mxu0 0.0
    %180 = vmatpush1.msra.mxu0 0.0
    %181 = vmatprep.subr.mxu0 0.0
    %182 = vmatpush1.msra.mxu0 0.0
    %183 = vmatprep.subr.mxu0 0.0
    %184 = vmatpush1.msra.mxu0 0.0
    %185 = vmatprep.subr.mxu0 0.0
    %186 = vmatpush1.msra.mxu0 0.0
    %187 = vmatprep.subr.mxu0 0.0
    %188 = vmatpush1.msra.mxu0 0.0
    %189 = vmatprep.subr.mxu0 0.0
    %190 = vmatpush1.msra.mxu0 0.0
    %191 = vmatprep.subr.mxu0 0.0
    %192 = vmatpush1.msra.mxu0 0.0
    %193 = vmatprep.subr.mxu0 0.0
    %194 = vmatpush1.msra.mxu0 0.0
    %195 = vmatprep.subr.mxu0 0.0
    %196 = vmatpush1.msra.mxu0 0.0
    %197 = vmatprep.subr.mxu0 0.0
    %198 = vmatpush1.msra.mxu0 0.0
    %199 = vmatprep.subr.mxu0 0.0
    %200 = vmatpush1.msra.mxu0 0.0
    %201 = vmatprep.subr.mxu0 0.0
    %202 = vmatpush1.msra.mxu0 0.0
    %203 = vmatprep.subr.mxu0 0.0
    %204 = vmatpush1.msra.mxu0 0.0
    %205 = vmatprep.subr.mxu0 0.0
    %206 = vmatpush1.msra.mxu0 0.0
    %207 = vmatprep.subr.mxu0 0.0
    %208 = vmatpush1.msra.mxu0 0.0
    %209 = vmatprep.subr.mxu0 0.0
    %210 = vmatpush1.msra.mxu0 0.0
    %211 = vmatprep.subr.mxu0 0.0
    %212 = vmatpush1.msra.mxu0 0.0
    %213 = vmatprep.subr.mxu0 0.0
    %214 = vmatpush1.msra.mxu0 0.0
    %215 = vmatprep.subr.mxu0 0.0
    %216 = vmatpush1.msra.mxu0 0.0
    %217 = vmatprep.subr.mxu0 0.0
    %218 = vmatpush1.msra.mxu0 0.0
    %219 = vmatprep.subr.mxu0 0.0
    %220 = vmatpush1.msra.mxu0 0.0
    %221 = vmatprep.subr.mxu0 0.0
    %222 = vmatpush1.msra.mxu0 0.0
    %223 = vmatprep.subr.mxu0 0.0
    %224 = vmatpush1.msra.mxu0 0.0
    %225 = vmatprep.subr.mxu0 0.0
    %226 = vmatpush1.msra.mxu0 0.0
    %227 = vmatprep.mubr.f32.mxu0 0.0
    %228 = vmatmul.mubr.f32.gmra.mrb[0].mxu0 %v161
    %v229 = vpop.f32.mrb[0].mxu0
    %v230 = vadd.f32 0.0, %v229
    %v231 = vpop.f32.mrb[0].mxu0
    %232 = vdwg.mxu0
    %v234 = vsel %vm159, %v123, 0
    %236 = vmatprep.subr.mxu0 0.0
    %237 = vmatpush1.msra.mxu0 %v150
    %238 = vmatprep.subr.mxu0 0.0
    %239 = vmatpush1.msra.mxu0 %v151
    %240 = vmatprep.subr.mxu0 0.0
    %241 = vmatpush1.msra.mxu0 %v152
    %242 = vmatprep.subr.mxu0 0.0
    %243 = vmatpush1.msra.mxu0 %v153
    %244 = vmatprep.subr.mxu0 0.0
    %245 = vmatpush1.msra.mxu0 0.0
    %246 = vmatprep.subr.mxu0 0.0
    %247 = vmatpush1.msra.mxu0 0.0
    %248 = vmatprep.subr.mxu0 0.0
    %249 = vmatpush1.msra.mxu0 0.0
    %250 = vmatprep.subr.mxu0 0.0
    %251 = vmatpush1.msra.mxu0 0.0
    %252 = vmatprep.subr.mxu0 0.0
    %253 = vmatpush1.msra.mxu0 0.0
    %254 = vmatprep.subr.mxu0 0.0
    %255 = vmatpush1.msra.mxu0 0.0
    %256 = vmatprep.subr.mxu0 0.0
    %257 = vmatpush1.msra.mxu0 0.0
    %258 = vmatprep.subr.mxu0 0.0
    %259 = vmatpush1.msra.mxu0 0.0
    %260 = vmatprep.subr.mxu0 0.0
    %261 = vmatpush1.msra.mxu0 0.0
    %262 = vmatprep.subr.mxu0 0.0
    %263 = vmatpush1.msra.mxu0 0.0
    %264 = vmatprep.subr.mxu0 0.0
    %265 = vmatpush1.msra.mxu0 0.0
    %266 = vmatprep.subr.mxu0 0.0
    %267 = vmatpush1.msra.mxu0 0.0
    %268 = vmatprep.subr.mxu0 0.0
    %269 = vmatpush1.msra.mxu0 0.0
    %270 = vmatprep.subr.mxu0 0.0
    %271 = vmatpush1.msra.mxu0 0.0
    %272 = vmatprep.subr.mxu0 0.0
    %273 = vmatpush1.msra.mxu0 0.0
    %274 = vmatprep.subr.mxu0 0.0
    %275 = vmatpush1.msra.mxu0 0.0
    %276 = vmatprep.subr.mxu0 0.0
    %277 = vmatpush1.msra.mxu0 0.0
    %278 = vmatprep.subr.mxu0 0.0
    %279 = vmatpush1.msra.mxu0 0.0
    %280 = vmatprep.subr.mxu0 0.0
    %281 = vmatpush1.msra.mxu0 0.0
    %282 = vmatprep.subr.mxu0 0.0
    %283 = vmatpush1.msra.mxu0 0.0
    %284 = vmatprep.subr.mxu0 0.0
    %285 = vmatpush1.msra.mxu0 0.0
    %286 = vmatprep.subr.mxu0 0.0
    %287 = vmatpush1.msra.mxu0 0.0
    %288 = vmatprep.subr.mxu0 0.0
    %289 = vmatpush1.msra.mxu0 0.0
    %290 = vmatprep.subr.mxu0 0.0
    %291 = vmatpush1.msra.mxu0 0.0
    %292 = vmatprep.subr.mxu0 0.0
    %293 = vmatpush1.msra.mxu0 0.0
    %294 = vmatprep.subr.mxu0 0.0
    %295 = vmatpush1.msra.mxu0 0.0
    %296 = vmatprep.subr.mxu0 0.0
    %297 = vmatpush1.msra.mxu0 0.0
    %298 = vmatprep.subr.mxu0 0.0
    %299 = vmatpush1.msra.mxu0 0.0
    %300 = vmatprep.mubr.f32.mxu0 0.0
    %301 = vmatmul.mubr.f32.gmra.mrb[0].mxu0 %v234
    %v302 = vpop.f32.mrb[0].mxu0
    %v303 = vadd.f32 %v230, %v302
    %v304 = vpop.f32.mrb[0].mxu0
    %305 = vdwg.mxu0
    %v306 = vld [vmem:[#allocation6] sm:$0x3]
    %v307 = vld [vmem:[#allocation9] sm:$0xf]
    %309 = vset.pattern.permute.xlu0 0
    %310 = vperm.xlu0 %309, %v306
    %v311 = vpop.permute.xlu0 %310
    %v313 = vlaneseq
    %v314 = vshrl.u32 %v313, 7
    %v315 = vsub.s32 0, %v314
    %v316 = vrot.slane %v307, %v315
    %v317 = vmul.f32 %v311, %v316
    %v318 = vadd.f32 %v303, %v317
    %319 = vset.pattern.permute.xlu0 1
    %320 = vperm.xlu0 %319, %v306
    %v321 = vpop.permute.xlu0 %320
    %v323 = vlaneseq
    %v324 = vshrl.u32 %v323, 7
    %v325 = vsub.s32 1, %v324
    %v326 = vrot.slane %v307, %v325
    %v327 = vmul.f32 %v321, %v326
    %v328 = vadd.f32 %v318, %v327
    %329 = vset.pattern.permute.xlu0 2
    %330 = vperm.xlu0 %329, %v306
    %v331 = vpop.permute.xlu0 %330
    %v333 = vlaneseq
    %v334 = vshrl.u32 %v333, 7
    %v335 = vsub.s32 2, %v334
    %v336 = vrot.slane %v307, %v335
    %v337 = vmul.f32 %v331, %v336
    %v338 = vadd.f32 %v328, %v337
    %339 = vset.pattern.permute.xlu0 3
    %340 = vperm.xlu0 %339, %v306
    %v341 = vpop.permute.xlu0 %340
    %v343 = vlaneseq
    %v344 = vshrl.u32 %v343, 7
    %v345 = vsub.s32 3, %v344
    %v346 = vrot.slane %v307, %v345
    %v347 = vmul.f32 %v341, %v346
    %v348 = vadd.f32 %v338, %v347
    %v349 = vld [vmem:[#allocation11] sm:$0x1]
    %v351 = vlaneseq
    %v352 = vshrl.u32 %v351, 7
    %v353 = vsub.s32 0, %v352
    %v354 = vrot.slane %v349, %v353
    %v356 = vadd.f32 %v348, %v354
    %v357 = vld [vmem:[#allocation12] sm:$0x1]
    %359 = vset.pattern.permute.xlu0 0
    %360 = vperm.xlu0 %359, %v149
    %v361 = vpop.permute.xlu0 %360
    %v364 = vlaneseq
    %v365 = vshrl.u32 %v364, 7
    %v366 = vsub.s32 0, %v365
    %v367 = vrot.slane %v357, %v366
    %v369 = vmul.f32 %v361, %v367
    %v370 = vadd.f32 %v356, %v369
    %v371 = vsub.f32 %v370, %v123
    %v372 = vmul.f32 %v361, %v371
    %v373 = vmul.f32 %v372, 0.01
    %v374 = vadd.f32 %v123, %v373
    %375 = vst.msk [vmem:[#allocation15] sm:$0x3] %vm132, %v374
    %376 = vst [vmem:[%s11] sm:$0x3] %v361
    // Predicated region
    $region70: #{enhanced_kan_forward.1} parent=1 // pred_check
      _
    $region71: #{enhanced_kan_forward.1} parent=1 // pred_check_branch
      %378 = sbr.rel (0) target = $region73
    $region72: #{enhanced_kan_forward.1} parent=1 // pred_region
      %s380 = ssub.s32 32, 32
      %381 = vsyncadd [#allocation5], %s380
      %s383 = sshll.u32 [#allocation15], 4
      %s384 = int_to_ptr.vmem [resolvable:$true] %s383
      %386 = dma.vmem_to_hbm [thread:$0]  %s384, 32, %s10, [#allocation5]
    $region73: #{enhanced_kan_forward.1} parent=1 // pred_fallthru
      _
    // Predicated region
    $region74: #{enhanced_kan_forward.1} parent=1 // pred_check
      _
    $region75: #{enhanced_kan_forward.1} parent=1 // pred_check_branch
      %388 = sbr.rel (0) target = $region77
    $region76: #{enhanced_kan_forward.1} parent=1 // pred_region
      _
    $region77: #{enhanced_kan_forward.1} parent=1 // pred_fallthru
      _
    // Predicated region
    $region78: #{enhanced_kan_forward.1} parent=1 // pred_check
      _
    $region79: #{enhanced_kan_forward.1} parent=1 // pred_check_branch
      %390 = sbr.rel (0) target = $region81
    $region80: #{enhanced_kan_forward.1} parent=1 // pred_region
      %391 = dma.done [#allocation5], 32
    $region81: #{enhanced_kan_forward.1} parent=1 // pred_fallthru
      _
    // Predicated region
    $region82: #{enhanced_kan_forward.1} parent=1 // pred_check
      _
    $region83: #{enhanced_kan_forward.1} parent=1 // pred_check_branch
      %393 = sbr.rel (0) target = $region85
    $region84: #{enhanced_kan_forward.1} parent=1 // pred_region
      _
    $region85: #{enhanced_kan_forward.1} parent=1 // pred_fallthru
      _
    %394 = vsyncpa [#allocation4], 1
    %395 = vsyncpa [#allocation7], 1
    %396 = vsyncpa [#allocation10], 1
    %397 = vsyncpa [#allocation13], 1
    %398 = vsyncpa [#allocation5], 1

</llo_original>
